<compile_context>
chip_gen: v5e
topology: v5e:2x2
jax: 0.10.0
libtpu: 0.0.40
codegen_flags: <defaults>
</compile_context>

<pallas_src>
import functools

import jax
import jax.numpy as jnp
from jax.experimental import pallas as pl
from jax.experimental.pallas import tpu as pltpu

IN_FEATURES = 3
H1, H2, H3 = 128, 256, 128
OUT_FEATURES = 200


def mlp_kernel(x_ref, w1_ref, b1_ref, w2_ref, b2_ref, w3_ref, b3_ref,
               w4_ref, b4_ref, o_ref):
    x = x_ref[...]            # (TM, 3)   f32
    w1 = w1_ref[...]          # (3, 128)  f32

    # Layer 1: K=3 would waste a full systolic-K MXU pass -> three VPU FMAs.
    h1 = (x[:, 0:1] * w1[0:1, :]
          + x[:, 1:2] * w1[1:2, :]
          + x[:, 2:3] * w1[2:3, :]
          + b1_ref[...])
    h1 = jnp.maximum(h1, 0.0)

    # Layers 2-4: bf16 operands into the MXU, f32 accumulate, f32 bias/ReLU
    # (f32 VPU path is required on v5e, which has no bf16 VALU).
    h2 = jnp.dot(h1.astype(jnp.bfloat16), w2_ref[...],
                 preferred_element_type=jnp.float32) + b2_ref[...]
    h2 = jnp.maximum(h2, 0.0)

    h3 = jnp.dot(h2.astype(jnp.bfloat16), w3_ref[...],
                 preferred_element_type=jnp.float32) + b3_ref[...]
    h3 = jnp.maximum(h3, 0.0)

    h4 = jnp.dot(h3.astype(jnp.bfloat16), w4_ref[...],
                 preferred_element_type=jnp.float32) + b4_ref[...]
    # Direct 200-wide store (second output vreg is a masked 72-lane vst; that
    # hits the VMEM vst slot which has slack, not the HBM DMA).
    o_ref[...] = h4.astype(o_ref.dtype)


def _round_up(x, m):
    return ((x + m - 1) // m) * m


def _vmem_limit_bytes(tm):
    """Rough double-buffered-tile + intermediates + weights footprint, ~2x headroom.

    Clamped to [32 MiB, 64 MiB]: v5e's default scoped limit is only 16 MiB,
    and v7x physically has 64 MiB per TensorCore.
    """
    x_bufs = 2 * tm * 128 * 4                 # (tm, 3) f32, lane-padded to 128
    out_bufs = 2 * tm * 256 * 4               # (tm, 200) f32, lane-padded to 256
    inter = tm * (H1 + H2 + H3 + 256) * 4 + tm * (H1 + H2 + H3) * 2
    weights = 2 * (8 * H1 * 4
                   + (H1 * H2 + H2 * H3 + H3 * 256) * 2
                   + (H1 + H2 + H3 + 256) * 4)
    est = x_bufs + out_bufs + inter + weights
    return int(min(max(2 * est, 32 << 20), 64 << 20))


@functools.partial(jax.jit, static_argnames=("tm",))
def chebyshev_net_forward(x, kparams, *, tm=2048):
    """x: (B, 3) float32.  kparams: kernel-layout params.  Returns (B, 200) f32."""
    B = x.shape[0]
    assert x.shape[1] == IN_FEATURES

    # Clamp the batch tile: multiple of 8 sublanes, no bigger than the padded
    # batch, and keep >=2 grid steps when the batch allows so the "parallel"
    # batch axis can shard across both v7x TensorCores.
    b_pad8 = _round_up(B, 8)
    tm = min(int(tm), b_pad8)
    tm = max(8, _round_up(tm, 8))
    if b_pad8 >= 16 and tm > b_pad8 // 2:
        tm = max(8, (b_pad8 // 2 // 8) * 8)

    b_pad = _round_up(B, tm)
    if b_pad != B:
        x = jnp.pad(x, ((0, b_pad - B), (0, 0)))

    w1, b1 = kparams["w1"], kparams["b1"]
    w2, b2 = kparams["w2"], kparams["b2"]
    w3, b3 = kparams["w3"], kparams["b3"]
    w4, b4 = kparams["w4"], kparams["b4"]

    def resident(arr):
        # Weights/biases stay VMEM-resident across every grid step.
        return pl.BlockSpec(arr.shape, lambda i: (0, 0))

    flops = 2 * b_pad * (IN_FEATURES * H1 + H1 * H2 + H2 * H3 + H3 * OUT_FEATURES)
    bytes_accessed = (
        b_pad * IN_FEATURES * 4 + b_pad * OUT_FEATURES * 4
        + (w1.size + b1.size + b2.size + b3.size + b4.size) * 4
        + (w2.size + w3.size + w4.size) * 2)

    out = pl.pallas_call(
        mlp_kernel,
        out_shape=jax.ShapeDtypeStruct((b_pad, OUT_FEATURES), jnp.float32),
        grid_spec=pltpu.PrefetchScalarGridSpec(
            num_scalar_prefetch=0,
            grid=(b_pad // tm,),
            in_specs=[
                # TODO(synk): on v7x, if VMEM gets tight at very large tm, pass
                # x transposed (3, B) with a lane-dense (3, tm) block instead of
                # this lane-padded (tm, 3) tile.
                pl.BlockSpec((tm, IN_FEATURES), lambda i: (i, 0)),  # x tile
                resident(w1), resident(b1),
                resident(w2), resident(b2),
                resident(w3), resident(b3),
                resident(w4), resident(b4),
            ],
            out_specs=pl.BlockSpec((tm, OUT_FEATURES), lambda i: (i, 0)),
        ),
        compiler_params=pltpu.CompilerParams(
            dimension_semantics=("parallel",),
            vmem_limit_bytes=_vmem_limit_bytes(tm)),
        cost_estimate=pl.CostEstimate(
            flops=flops, transcendentals=0, bytes_accessed=bytes_accessed),
    )(x, w1, b1, w2, b2, w3, b3, w4, b4)

    return out[:B] if b_pad != B else out


def init_params(key):
    """Canonical f32 parameters matching nn.Linear init (stored transposed: (in, out))."""
    sizes = [(IN_FEATURES, H1), (H1, H2), (H2, H3), (H3, OUT_FEATURES)]
    params = {}
    for i, (fan_in, fan_out) in enumerate(sizes, start=1):
        key, kw, kb = jax.random.split(key, 3)
        bound = 1.0 / jnp.sqrt(fan_in)
        params[f"w{i}"] = jax.random.uniform(
            kw, (fan_in, fan_out), jnp.float32, -bound, bound)
        params[f"b{i}"] = jax.random.uniform(
            kb, (1, fan_out), jnp.float32, -bound, bound)
    return params


def prepare_params(params):
    """Kernel layout: w1 stays f32 (VPU layer), w2..w4 -> bf16, biases f32."""
    return {
        "w1": params["w1"].astype(jnp.float32),
        "b1": params["b1"].astype(jnp.float32),
        "w2": params["w2"].astype(jnp.bfloat16),
        "b2": params["b2"].astype(jnp.float32),
        "w3": params["w3"].astype(jnp.bfloat16),
        "b3": params["b3"].astype(jnp.float32),
        "w4": params["w4"].astype(jnp.bfloat16),
        "b4": params["b4"].astype(jnp.float32),
    }


def reference_forward(x, params):
    """Plain-JAX f32 reference (mirrors the PyTorch forward)."""
    h = jnp.maximum(x @ params["w1"] + params["b1"], 0.0)
    h = jnp.maximum(h @ params["w2"] + params["b2"], 0.0)
    h = jnp.maximum(h @ params["w3"] + params["b3"], 0.0)
    return h @ params["w4"] + params["b4"]


if __name__ == "__main__":
    key = jax.random.PRNGKey(0)
    key, kx1, kx2 = jax.random.split(key, 3)

    params = init_params(key)
    kparams = prepare_params(params)

    # Small batch, deliberately not a multiple of 8 -> exercises pad + row slice.
    batch = 20
    x = jax.random.normal(kx1, (batch, IN_FEATURES), dtype=jnp.float32)
    out = jax.block_until_ready(chebyshev_net_forward(x, kparams))
    out_tiled = jax.block_until_ready(chebyshev_net_forward(x, kparams, tm=8))

    ref = reference_forward(x, params)
    assert out.shape == (batch, OUT_FEATURES), out.shape
    # bf16 MXU layers -> relaxed tolerance vs f32 reference.
    assert jnp.allclose(out, ref, atol=2e-2, rtol=2e-2), "mismatch vs reference"
    assert jnp.allclose(out_tiled, ref, atol=2e-2, rtol=2e-2), "tiled mismatch"

    # Slightly larger batch: multi-step grid with the auto-clamped tile.
    batch2 = 64
    x2 = jax.random.normal(kx2, (batch2, IN_FEATURES), dtype=jnp.float32)
    out2 = jax.block_until_ready(chebyshev_net_forward(x2, kparams))
    ref2 = reference_forward(x2, params)
    assert out2.shape == (batch2, OUT_FEATURES), out2.shape
    assert jnp.allclose(out2, ref2, atol=2e-2, rtol=2e-2), "batch-64 mismatch"

    print("KERNEL_OK")
</pallas_src>

<mosaic_0001>
module attributes {stable_mosaic.version = 11 : i64} {
  func.func @mlp_kernel(%arg0: i32, %arg1: memref<8x3xf32, #tpu.memory_space<vmem>>, %arg2: memref<3x128xf32, #tpu.memory_space<vmem>>, %arg3: memref<1x128xf32, #tpu.memory_space<vmem>>, %arg4: memref<128x256xbf16, #tpu.memory_space<vmem>>, %arg5: memref<1x256xf32, #tpu.memory_space<vmem>>, %arg6: memref<256x128xbf16, #tpu.memory_space<vmem>>, %arg7: memref<1x128xf32, #tpu.memory_space<vmem>>, %arg8: memref<128x200xbf16, #tpu.memory_space<vmem>>, %arg9: memref<1x200xf32, #tpu.memory_space<vmem>>, %arg10: memref<8x200xf32, #tpu.memory_space<vmem>>) attributes {dimension_semantics = [#tpu.dimension_semantics<parallel>], iteration_bounds = array<i64: 3>, scalar_prefetch = 0 : i64, scratch_operands = 0 : i64, tpu.core_type = #tpu.core_type<tc>, window_params = [{transform_indices = @transform_0, window_bounds = array<i64: 8, 3>}, {pipeline_mode = #tpu.pipeline_mode<synchronous>, transform_indices = @transform_1, window_bounds = array<i64: 3, 128>}, {pipeline_mode = #tpu.pipeline_mode<synchronous>, transform_indices = @transform_2, window_bounds = array<i64: 1, 128>}, {pipeline_mode = #tpu.pipeline_mode<synchronous>, transform_indices = @transform_3, window_bounds = array<i64: 128, 256>}, {pipeline_mode = #tpu.pipeline_mode<synchronous>, transform_indices = @transform_4, window_bounds = array<i64: 1, 256>}, {pipeline_mode = #tpu.pipeline_mode<synchronous>, transform_indices = @transform_5, window_bounds = array<i64: 256, 128>}, {pipeline_mode = #tpu.pipeline_mode<synchronous>, transform_indices = @transform_6, window_bounds = array<i64: 1, 128>}, {pipeline_mode = #tpu.pipeline_mode<synchronous>, transform_indices = @transform_7, window_bounds = array<i64: 128, 200>}, {pipeline_mode = #tpu.pipeline_mode<synchronous>, transform_indices = @transform_8, window_bounds = array<i64: 1, 200>}, {transform_indices = @transform_9, window_bounds = array<i64: 8, 200>}]} {
    %c0 = arith.constant 0 : index
    %c0_0 = arith.constant 0 : index
    %0 = vector.load %arg1[%c0, %c0_0] : memref<8x3xf32, #tpu.memory_space<vmem>>, vector<8x3xf32>
    %c0_1 = arith.constant 0 : index
    %c0_2 = arith.constant 0 : index
    %1 = vector.load %arg2[%c0_1, %c0_2] : memref<3x128xf32, #tpu.memory_space<vmem>>, vector<3x128xf32>
    %2 = vector.extract_strided_slice %0 {offsets = [0, 0], sizes = [8, 1], strides = [1, 1]} : vector<8x3xf32> to vector<8x1xf32>
    %3 = vector.extract_strided_slice %1 {offsets = [0, 0], sizes = [1, 128], strides = [1, 1]} : vector<3x128xf32> to vector<1x128xf32>
    %4 = vector.broadcast %2 : vector<8x1xf32> to vector<8x128xf32>
    %5 = vector.broadcast %3 : vector<1x128xf32> to vector<8x128xf32>
    %6 = arith.mulf %4, %5 : vector<8x128xf32>
    %7 = vector.extract_strided_slice %0 {offsets = [0, 1], sizes = [8, 1], strides = [1, 1]} : vector<8x3xf32> to vector<8x1xf32>
    %8 = vector.extract_strided_slice %1 {offsets = [1, 0], sizes = [1, 128], strides = [1, 1]} : vector<3x128xf32> to vector<1x128xf32>
    %9 = vector.broadcast %7 : vector<8x1xf32> to vector<8x128xf32>
    %10 = vector.broadcast %8 : vector<1x128xf32> to vector<8x128xf32>
    %11 = arith.mulf %9, %10 : vector<8x128xf32>
    %12 = arith.addf %6, %11 : vector<8x128xf32>
    %13 = vector.extract_strided_slice %0 {offsets = [0, 2], sizes = [8, 1], strides = [1, 1]} : vector<8x3xf32> to vector<8x1xf32>
    %14 = vector.extract_strided_slice %1 {offsets = [2, 0], sizes = [1, 128], strides = [1, 1]} : vector<3x128xf32> to vector<1x128xf32>
    %15 = vector.broadcast %13 : vector<8x1xf32> to vector<8x128xf32>
    %16 = vector.broadcast %14 : vector<1x128xf32> to vector<8x128xf32>
    %17 = arith.mulf %15, %16 : vector<8x128xf32>
    %18 = arith.addf %12, %17 : vector<8x128xf32>
    %c0_3 = arith.constant 0 : index
    %c0_4 = arith.constant 0 : index
    %19 = vector.load %arg3[%c0_3, %c0_4] : memref<1x128xf32, #tpu.memory_space<vmem>>, vector<1x128xf32>
    %20 = vector.broadcast %19 : vector<1x128xf32> to vector<8x128xf32>
    %21 = arith.addf %18, %20 : vector<8x128xf32>
    %cst = arith.constant 0.000000e+00 : f32
    %22 = vector.broadcast %cst : f32 to vector<8x128xf32>
    %23 = arith.maximumf %21, %22 : vector<8x128xf32>
    %24 = arith.truncf %23 : vector<8x128xf32> to vector<8x128xbf16>
    %c0_5 = arith.constant 0 : index
    %c0_6 = arith.constant 0 : index
    %25 = vector.load %arg4[%c0_5, %c0_6] : memref<128x256xbf16, #tpu.memory_space<vmem>>, vector<128x256xbf16>
    %cst_7 = arith.constant dense<0.000000e+00> : vector<8x256xf32>
    %26 = tpu.matmul %24, %25, %cst_7 {dimension_numbers = #tpu.dot_dimension_numbers<[1], [0], [0], [1], [0, 0, 1, 1], [], []>} : vector<8x128xbf16>, vector<128x256xbf16>, vector<8x256xf32> -> vector<8x256xf32>
    %c0_8 = arith.constant 0 : index
    %c0_9 = arith.constant 0 : index
    %27 = vector.load %arg5[%c0_8, %c0_9] : memref<1x256xf32, #tpu.memory_space<vmem>>, vector<1x256xf32>
    %28 = vector.broadcast %27 : vector<1x256xf32> to vector<8x256xf32>
    %29 = arith.addf %26, %28 : vector<8x256xf32>
    %cst_10 = arith.constant 0.000000e+00 : f32
    %30 = vector.broadcast %cst_10 : f32 to vector<8x256xf32>
    %31 = arith.maximumf %29, %30 : vector<8x256xf32>
    %32 = arith.truncf %31 : vector<8x256xf32> to vector<8x256xbf16>
    %c0_11 = arith.constant 0 : index
    %c0_12 = arith.constant 0 : index
    %33 = vector.load %arg6[%c0_11, %c0_12] : memref<256x128xbf16, #tpu.memory_space<vmem>>, vector<256x128xbf16>
    %cst_13 = arith.constant dense<0.000000e+00> : vector<8x128xf32>
    %34 = tpu.matmul %32, %33, %cst_13 {dimension_numbers = #tpu.dot_dimension_numbers<[1], [0], [0], [1], [0, 0, 1, 1], [], []>} : vector<8x256xbf16>, vector<256x128xbf16>, vector<8x128xf32> -> vector<8x128xf32>
    %c0_14 = arith.constant 0 : index
    %c0_15 = arith.constant 0 : index
    %35 = vector.load %arg7[%c0_14, %c0_15] : memref<1x128xf32, #tpu.memory_space<vmem>>, vector<1x128xf32>
    %36 = vector.broadcast %35 : vector<1x128xf32> to vector<8x128xf32>
    %37 = arith.addf %34, %36 : vector<8x128xf32>
    %cst_16 = arith.constant 0.000000e+00 : f32
    %38 = vector.broadcast %cst_16 : f32 to vector<8x128xf32>
    %39 = arith.maximumf %37, %38 : vector<8x128xf32>
    %40 = arith.truncf %39 : vector<8x128xf32> to vector<8x128xbf16>
    %c0_17 = arith.constant 0 : index
    %c0_18 = arith.constant 0 : index
    %41 = vector.load %arg8[%c0_17, %c0_18] : memref<128x200xbf16, #tpu.memory_space<vmem>>, vector<128x200xbf16>
    %cst_19 = arith.constant dense<0.000000e+00> : vector<8x200xf32>
    %42 = tpu.matmul %40, %41, %cst_19 {dimension_numbers = #tpu.dot_dimension_numbers<[1], [0], [0], [1], [0, 0, 1, 1], [], []>} : vector<8x128xbf16>, vector<128x200xbf16>, vector<8x200xf32> -> vector<8x200xf32>
    %c0_20 = arith.constant 0 : index
    %c0_21 = arith.constant 0 : index
    %43 = vector.load %arg9[%c0_20, %c0_21] : memref<1x200xf32, #tpu.memory_space<vmem>>, vector<1x200xf32>
    %44 = vector.broadcast %43 : vector<1x200xf32> to vector<8x200xf32>
    %45 = arith.addf %42, %44 : vector<8x200xf32>
    %c0_22 = arith.constant 0 : index
    %c0_23 = arith.constant 0 : index
    %46 = vector.load %arg10[%c0_22, %c0_23] : memref<8x200xf32, #tpu.memory_space<vmem>>, vector<8x200xf32>
    tpu.vector_store %arg10[%c0_22, %c0_23], %45 {strides = array<i32>} : memref<8x200xf32, #tpu.memory_space<vmem>>, vector<8x200xf32>,
    return
  }
  func.func @transform_0(%arg0: i32) -> (i32, i32) {
    %c0_i32 = arith.constant 0 : i32
    %c0_i32_0 = arith.constant 0 : i32
    return %arg0, %c0_i32 : i32, i32
  }
  func.func @transform_1(%arg0: i32) -> (i32, i32) {
    %c0_i32 = arith.constant 0 : i32
    %c0_i32_0 = arith.constant 0 : i32
    %c0_i32_1 = arith.constant 0 : i32
    return %c0_i32, %c0_i32_0 : i32, i32
  }
  func.func @transform_2(%arg0: i32) -> (i32, i32) {
    %c0_i32 = arith.constant 0 : i32
    %c0_i32_0 = arith.constant 0 : i32
    %c0_i32_1 = arith.constant 0 : i32
    return %c0_i32, %c0_i32_0 : i32, i32
  }
  func.func @transform_3(%arg0: i32) -> (i32, i32) {
    %c0_i32 = arith.constant 0 : i32
    %c0_i32_0 = arith.constant 0 : i32
    %c0_i32_1 = arith.constant 0 : i32
    return %c0_i32, %c0_i32_0 : i32, i32
  }
  func.func @transform_4(%arg0: i32) -> (i32, i32) {
    %c0_i32 = arith.constant 0 : i32
    %c0_i32_0 = arith.constant 0 : i32
    %c0_i32_1 = arith.constant 0 : i32
    return %c0_i32, %c0_i32_0 : i32, i32
  }
  func.func @transform_5(%arg0: i32) -> (i32, i32) {
    %c0_i32 = arith.constant 0 : i32
    %c0_i32_0 = arith.constant 0 : i32
    %c0_i32_1 = arith.constant 0 : i32
    return %c0_i32, %c0_i32_0 : i32, i32
  }
  func.func @transform_6(%arg0: i32) -> (i32, i32) {
    %c0_i32 = arith.constant 0 : i32
    %c0_i32_0 = arith.constant 0 : i32
    %c0_i32_1 = arith.constant 0 : i32
    return %c0_i32, %c0_i32_0 : i32, i32
  }
  func.func @transform_7(%arg0: i32) -> (i32, i32) {
    %c0_i32 = arith.constant 0 : i32
    %c0_i32_0 = arith.constant 0 : i32
    %c0_i32_1 = arith.constant 0 : i32
    return %c0_i32, %c0_i32_0 : i32, i32
  }
  func.func @transform_8(%arg0: i32) -> (i32, i32) {
    %c0_i32 = arith.constant 0 : i32
    %c0_i32_0 = arith.constant 0 : i32
    %c0_i32_1 = arith.constant 0 : i32
    return %c0_i32, %c0_i32_0 : i32, i32
  }
  func.func @transform_9(%arg0: i32) -> (i32, i32) {
    %c0_i32 = arith.constant 0 : i32
    %c0_i32_0 = arith.constant 0 : i32
    return %arg0, %c0_i32 : i32, i32
  }
}

</mosaic_0001>

<llo_original>
// kernel: chebyshev_net_forward.1
$region0: #{chebyshev_net_forward.1}
  #allocation0 [shape = 'u32[]', space=smem, size = 0x4, offset = 0x4, fixed_abs, tag = 'smem constant byte address 0x4 - core index']
  #allocation1 [shape = 'u32[72,128]{1,0:T(1,128)}', space=vmem, size = 0x9000, scoped, tag = 'internal scratch']
  %s0 = inlined_call_operand.vmem [shape: f32[24,3], index: 0, kind: input, shape index: {}]
  %s1 = inlined_call_operand.vmem [shape: f32[3,128], index: 1, kind: input, shape index: {}]
  %s2 = inlined_call_operand.vmem [shape: f32[1,128], index: 2, kind: input, shape index: {}]
  %s3 = inlined_call_operand.vmem [shape: bf16[128,256], index: 3, kind: input, shape index: {}]
  %s4 = inlined_call_operand.vmem [shape: f32[1,256], index: 4, kind: input, shape index: {}]
  %s5 = inlined_call_operand.vmem [shape: bf16[256,128], index: 5, kind: input, shape index: {}]
  %s6 = inlined_call_operand.vmem [shape: f32[1,128], index: 6, kind: input, shape index: {}]
  %s7 = inlined_call_operand.vmem [shape: bf16[128,200], index: 7, kind: input, shape index: {}]
  %s8 = inlined_call_operand.vmem [shape: f32[1,200], index: 8, kind: input, shape index: {}]
  %s9 = inlined_call_operand.hbm [shape: f32[24,200], index: 9, kind: output, shape index: {}]
  %s10 = sld [smem:[#allocation0]]
  $region69: #{chebyshev_net_forward.1} parent=0
    _
  %s12 = ssub.s32 1, %s10
  %s13 = scalar_select 0, %s12, %s10
  $region1: #{chebyshev_net_forward.1} parent=0
    #allocation2 [shape = 'u8[16384]{0}', space=vmem, size = 0x4000, scoped, tag = 'output window, operand 0']
    #allocation3 [shape = 's32[2]{0}', space=sflag, size = 0x8, scoped, tag = 'scoped memory for chebyshev_net_forward.1']
    %14 = vsyncpa [#allocation3], 0
    %s15 = scalar_lea.sflag [#allocation3], 1
    %16 = vsyncpa %s15, 0
    loop: start=0, step=1, limit=5
    $region2: #{chebyshev_net_forward.1} parent=1 // loop_pre_header
      _
    $region3: #{chebyshev_net_forward.1} parent=1 // loop_header
      %s18 = sphi 0, %s22
      %p19 = scmp.ge.s32.totalorder %s18, 5
      %s28 = sphi 0, %s30
      %s31 = sphi 0, %s28
      %s32 = sphi 0, %s31
      %s48 = sphi 0, %s32
      %s52 = sphi 0, %s52
      %s54 = sphi 0, %s52
      %s55 = sphi 0, %s54
      %s69 = sphi 0, %s55
      %s73 = sphi 0, %s73
      %s75 = sphi 0, %s73
      %s76 = sphi 0, %s75
      %s90 = sphi 0, %s76
      %s94 = sphi 0, %s94
      %s96 = sphi 0, %s94
      %s97 = sphi 0, %s96
      %s111 = sphi 0, %s97
      %s115 = sphi 0, %s115
      %s117 = sphi 0, %s115
      %s118 = sphi 0, %s117
      %s132 = sphi 0, %s118
      %s136 = sphi 0, %s136
      %s138 = sphi 0, %s136
      %s139 = sphi 0, %s138
      %s153 = sphi 0, %s139
      %s157 = sphi 0, %s157
      %s159 = sphi 0, %s157
      %s160 = sphi 0, %s159
      %s174 = sphi 0, %s160
      %s178 = sphi 0, %s178
      %s180 = sphi 0, %s178
      %s181 = sphi 0, %s180
      %s195 = sphi 0, %s181
      %s199 = sphi 0, %s199
      %s201 = sphi 0, %s199
      %s202 = sphi 0, %s201
      %s216 = sphi 0, %s202
      %s222 = sphi 0, %s224
      %s225 = sphi 0, %s222
      %s226 = sphi 0, %s225
      %s242 = sphi 0, %s226
    $region4: #{chebyshev_net_forward.1} parent=1 // loop_header_branch
      %21 = sbr.rel (%p19) target = $region8
    $region5: #{chebyshev_net_forward.1} parent=1 // loop_body
      %s23 = ssub.s32 %s18, 1
      %s24 = ssub.s32 %s18, 2
      %s25 = sadd.s32 %s18, 1
      %s26 = ssub.s32 %s18, %s25
      %p27 = scmp.eq.s32.totalorder %s26, 0
      %s29 = sadd.s32 %s28, 1
      %s30 = scalar_select %p27, %s28, %s29
      %p33 = pneg %p27
      %p34 = scmp.eq.s32.totalorder %s18, 2
      %p35 = por %p33, %p34
      %p36 = scmp.ne.s32.totalorder %s28, %s31
      %p37 = scmp.eq.s32.totalorder %s18, 0
      %p38 = por %p36, %p37
      %p39 = scmp.ne.s32.totalorder %s28, %s31
      %p40 = scmp.eq.s32.totalorder %s23, 2
      %p41 = por %p39, %p40
      %p42 = scmp.ne.s32.totalorder %s31, %s32
      %p43 = scmp.eq.s32.totalorder %s23, 0
      %p44 = por %p42, %p43
      %p45 = scmp.ne.s32.totalorder %s31, %s32
      %p46 = scmp.eq.s32.totalorder %s24, 2
      %p47 = por %p45, %p46
      %p49 = scmp.ne.s32.totalorder %s32, %s48
      %p50 = scmp.eq.s32.totalorder %s24, 0
      %p51 = por %p49, %p50
      %s53 = sadd.s32 %s52, 1
      %p56 = scmp.eq.s32.totalorder %s18, 2
      %p57 = scmp.ne.s32.totalorder %s52, %s54
      %p58 = scmp.eq.s32.totalorder %s18, 0
      %p59 = por %p57, %p58
      %p60 = scmp.ne.s32.totalorder %s52, %s54
      %p61 = scmp.eq.s32.totalorder %s23, 2
      %p62 = por %p60, %p61
      %p63 = scmp.ne.s32.totalorder %s54, %s55
      %p64 = scmp.eq.s32.totalorder %s23, 0
      %p65 = por %p63, %p64
      %p66 = scmp.ne.s32.totalorder %s54, %s55
      %p67 = scmp.eq.s32.totalorder %s24, 2
      %p68 = por %p66, %p67
      %p70 = scmp.ne.s32.totalorder %s55, %s69
      %p71 = scmp.eq.s32.totalorder %s24, 0
      %p72 = por %p70, %p71
      %s74 = sadd.s32 %s73, 1
      %p77 = scmp.eq.s32.totalorder %s18, 2
      %p78 = scmp.ne.s32.totalorder %s73, %s75
      %p79 = scmp.eq.s32.totalorder %s18, 0
      %p80 = por %p78, %p79
      %p81 = scmp.ne.s32.totalorder %s73, %s75
      %p82 = scmp.eq.s32.totalorder %s23, 2
      %p83 = por %p81, %p82
      %p84 = scmp.ne.s32.totalorder %s75, %s76
      %p85 = scmp.eq.s32.totalorder %s23, 0
      %p86 = por %p84, %p85
      %p87 = scmp.ne.s32.totalorder %s75, %s76
      %p88 = scmp.eq.s32.totalorder %s24, 2
      %p89 = por %p87, %p88
      %p91 = scmp.ne.s32.totalorder %s76, %s90
      %p92 = scmp.eq.s32.totalorder %s24, 0
      %p93 = por %p91, %p92
      %s95 = sadd.s32 %s94, 1
      %p98 = scmp.eq.s32.totalorder %s18, 2
      %p99 = scmp.ne.s32.totalorder %s94, %s96
      %p100 = scmp.eq.s32.totalorder %s18, 0
      %p101 = por %p99, %p100
      %p102 = scmp.ne.s32.totalorder %s94, %s96
      %p103 = scmp.eq.s32.totalorder %s23, 2
      %p104 = por %p102, %p103
      %p105 = scmp.ne.s32.totalorder %s96, %s97
      %p106 = scmp.eq.s32.totalorder %s23, 0
      %p107 = por %p105, %p106
      %p108 = scmp.ne.s32.totalorder %s96, %s97
      %p109 = scmp.eq.s32.totalorder %s24, 2
      %p110 = por %p108, %p109
      %p112 = scmp.ne.s32.totalorder %s97, %s111
      %p113 = scmp.eq.s32.totalorder %s24, 0
      %p114 = por %p112, %p113
      %s116 = sadd.s32 %s115, 1
      %p119 = scmp.eq.s32.totalorder %s18, 2
      %p120 = scmp.ne.s32.totalorder %s115, %s117
      %p121 = scmp.eq.s32.totalorder %s18, 0
      %p122 = por %p120, %p121
      %p123 = scmp.ne.s32.totalorder %s115, %s117
      %p124 = scmp.eq.s32.totalorder %s23, 2
      %p125 = por %p123, %p124
      %p126 = scmp.ne.s32.totalorder %s117, %s118
      %p127 = scmp.eq.s32.totalorder %s23, 0
      %p128 = por %p126, %p127
      %p129 = scmp.ne.s32.totalorder %s117, %s118
      %p130 = scmp.eq.s32.totalorder %s24, 2
      %p131 = por %p129, %p130
      %p133 = scmp.ne.s32.totalorder %s118, %s132
      %p134 = scmp.eq.s32.totalorder %s24, 0
      %p135 = por %p133, %p134
      %s137 = sadd.s32 %s136, 1
      %p140 = scmp.eq.s32.totalorder %s18, 2
      %p141 = scmp.ne.s32.totalorder %s136, %s138
      %p142 = scmp.eq.s32.totalorder %s18, 0
      %p143 = por %p141, %p142
      %p144 = scmp.ne.s32.totalorder %s136, %s138
      %p145 = scmp.eq.s32.totalorder %s23, 2
      %p146 = por %p144, %p145
      %p147 = scmp.ne.s32.totalorder %s138, %s139
      %p148 = scmp.eq.s32.totalorder %s23, 0
      %p149 = por %p147, %p148
      %p150 = scmp.ne.s32.totalorder %s138, %s139
      %p151 = scmp.eq.s32.totalorder %s24, 2
      %p152 = por %p150, %p151
      %p154 = scmp.ne.s32.totalorder %s139, %s153
      %p155 = scmp.eq.s32.totalorder %s24, 0
      %p156 = por %p154, %p155
      %s158 = sadd.s32 %s157, 1
      %p161 = scmp.eq.s32.totalorder %s18, 2
      %p162 = scmp.ne.s32.totalorder %s157, %s159
      %p163 = scmp.eq.s32.totalorder %s18, 0
      %p164 = por %p162, %p163
      %p165 = scmp.ne.s32.totalorder %s157, %s159
      %p166 = scmp.eq.s32.totalorder %s23, 2
      %p167 = por %p165, %p166
      %p168 = scmp.ne.s32.totalorder %s159, %s160
      %p169 = scmp.eq.s32.totalorder %s23, 0
      %p170 = por %p168, %p169
      %p171 = scmp.ne.s32.totalorder %s159, %s160
      %p172 = scmp.eq.s32.totalorder %s24, 2
      %p173 = por %p171, %p172
      %p175 = scmp.ne.s32.totalorder %s160, %s174
      %p176 = scmp.eq.s32.totalorder %s24, 0
      %p177 = por %p175, %p176
      %s179 = sadd.s32 %s178, 1
      %p182 = scmp.eq.s32.totalorder %s18, 2
      %p183 = scmp.ne.s32.totalorder %s178, %s180
      %p184 = scmp.eq.s32.totalorder %s18, 0
      %p185 = por %p183, %p184
      %p186 = scmp.ne.s32.totalorder %s178, %s180
      %p187 = scmp.eq.s32.totalorder %s23, 2
      %p188 = por %p186, %p187
      %p189 = scmp.ne.s32.totalorder %s180, %s181
      %p190 = scmp.eq.s32.totalorder %s23, 0
      %p191 = por %p189, %p190
      %p192 = scmp.ne.s32.totalorder %s180, %s181
      %p193 = scmp.eq.s32.totalorder %s24, 2
      %p194 = por %p192, %p193
      %p196 = scmp.ne.s32.totalorder %s181, %s195
      %p197 = scmp.eq.s32.totalorder %s24, 0
      %p198 = por %p196, %p197
      %s200 = sadd.s32 %s199, 1
      %p203 = scmp.eq.s32.totalorder %s18, 2
      %p204 = scmp.ne.s32.totalorder %s199, %s201
      %p205 = scmp.eq.s32.totalorder %s18, 0
      %p206 = por %p204, %p205
      %p207 = scmp.ne.s32.totalorder %s199, %s201
      %p208 = scmp.eq.s32.totalorder %s23, 2
      %p209 = por %p207, %p208
      %p210 = scmp.ne.s32.totalorder %s201, %s202
      %p211 = scmp.eq.s32.totalorder %s23, 0
      %p212 = por %p210, %p211
      %p213 = scmp.ne.s32.totalorder %s201, %s202
      %p214 = scmp.eq.s32.totalorder %s24, 2
      %p215 = por %p213, %p214
      %p217 = scmp.ne.s32.totalorder %s202, %s216
      %p218 = scmp.eq.s32.totalorder %s24, 0
      %p219 = por %p217, %p218
      %s220 = ssub.s32 %s18, %s25
      %p221 = scmp.eq.s32.totalorder %s220, 0
      %s223 = sadd.s32 %s222, 1
      %s224 = scalar_select %p221, %s222, %s223
      %p227 = pneg %p221
      %p228 = scmp.eq.s32.totalorder %s18, 2
      %p229 = por %p227, %p228
      %p230 = scmp.ne.s32.totalorder %s222, %s225
      %p231 = scmp.eq.s32.totalorder %s18, 0
      %p232 = por %p230, %p231
      %p233 = scmp.ne.s32.totalorder %s222, %s225
      %p234 = scmp.eq.s32.totalorder %s23, 2
      %p235 = por %p233, %p234
      %p236 = scmp.ne.s32.totalorder %s225, %s226
      %p237 = scmp.eq.s32.totalorder %s23, 0
      %p238 = por %p236, %p237
      %p239 = scmp.ne.s32.totalorder %s225, %s226
      %p240 = scmp.eq.s32.totalorder %s24, 2
      %p241 = por %p239, %p240
      %p243 = scmp.ne.s32.totalorder %s226, %s242
      %p244 = scmp.eq.s32.totalorder %s24, 0
      %p245 = por %p243, %p244
      %p246 = scmp.le.s32.totalorder 1, %s18
      %p247 = scmp.lt.s32.totalorder %s18, 4
      %p248 = pnand %p246, %p247
      %p249 = pneg %p248
      // Predicated region
      $region9: #{chebyshev_net_forward.1} parent=5 // pred_check
        _
      $region10: #{chebyshev_net_forward.1} parent=5 // pred_check_branch
        %251 = sbr.rel (%p248) target = $region12
      $region11: #{chebyshev_net_forward.1} parent=5 // pred_region
        %s252 = ssub.s32 %s18, 1
        // Predicated region
        $region13: #{chebyshev_net_forward.1} parent=11 // pred_check
          %p253 = pneg %p65
        $region14: #{chebyshev_net_forward.1} parent=11 // pred_check_branch
          %255 = sbr.rel (%p253) target = $region16
        $region15: #{chebyshev_net_forward.1} parent=11 // pred_region
          _
        $region16: #{chebyshev_net_forward.1} parent=11 // pred_fallthru
          _
        // Predicated region
        $region17: #{chebyshev_net_forward.1} parent=11 // pred_check
          %p256 = pneg %p86
        $region18: #{chebyshev_net_forward.1} parent=11 // pred_check_branch
          %258 = sbr.rel (%p256) target = $region20
        $region19: #{chebyshev_net_forward.1} parent=11 // pred_region
          _
        $region20: #{chebyshev_net_forward.1} parent=11 // pred_fallthru
          _
        // Predicated region
        $region21: #{chebyshev_net_forward.1} parent=11 // pred_check
          %p259 = pneg %p107
        $region22: #{chebyshev_net_forward.1} parent=11 // pred_check_branch
          %261 = sbr.rel (%p259) target = $region24
        $region23: #{chebyshev_net_forward.1} parent=11 // pred_region
          _
        $region24: #{chebyshev_net_forward.1} parent=11 // pred_fallthru
          _
        // Predicated region
        $region25: #{chebyshev_net_forward.1} parent=11 // pred_check
          %p262 = pneg %p128
        $region26: #{chebyshev_net_forward.1} parent=11 // pred_check_branch
          %264 = sbr.rel (%p262) target = $region28
        $region27: #{chebyshev_net_forward.1} parent=11 // pred_region
          _
        $region28: #{chebyshev_net_forward.1} parent=11 // pred_fallthru
          _
        // Predicated region
        $region29: #{chebyshev_net_forward.1} parent=11 // pred_check
          %p265 = pneg %p149
        $region30: #{chebyshev_net_forward.1} parent=11 // pred_check_branch
          %267 = sbr.rel (%p265) target = $region32
        $region31: #{chebyshev_net_forward.1} parent=11 // pred_region
          _
        $region32: #{chebyshev_net_forward.1} parent=11 // pred_fallthru
          _
        // Predicated region
        $region33: #{chebyshev_net_forward.1} parent=11 // pred_check
          %p268 = pneg %p170
        $region34: #{chebyshev_net_forward.1} parent=11 // pred_check_branch
          %270 = sbr.rel (%p268) target = $region36
        $region35: #{chebyshev_net_forward.1} parent=11 // pred_region
          _
        $region36: #{chebyshev_net_forward.1} parent=11 // pred_fallthru
          _
        // Predicated region
        $region37: #{chebyshev_net_forward.1} parent=11 // pred_check
          %p271 = pneg %p191
        $region38: #{chebyshev_net_forward.1} parent=11 // pred_check_branch
          %273 = sbr.rel (%p271) target = $region40
        $region39: #{chebyshev_net_forward.1} parent=11 // pred_region
          _
        $region40: #{chebyshev_net_forward.1} parent=11 // pred_fallthru
          _
        // Predicated region
        $region41: #{chebyshev_net_forward.1} parent=11 // pred_check
          %p274 = pneg %p212
        $region42: #{chebyshev_net_forward.1} parent=11 // pred_check_branch
          %276 = sbr.rel (%p274) target = $region44
        $region43: #{chebyshev_net_forward.1} parent=11 // pred_region
          _
        $region44: #{chebyshev_net_forward.1} parent=11 // pred_fallthru
          _
      $region12: #{chebyshev_net_forward.1} parent=5 // pred_fallthru
        _
      %p277 = scmp.lt.s32.totalorder %s18, 3
      // Predicated region
      $region45: #{chebyshev_net_forward.1} parent=5 // pred_check
        %p278 = pneg %p277
      $region46: #{chebyshev_net_forward.1} parent=5 // pred_check_branch
        %280 = sbr.rel (%p278) target = $region48
      $region47: #{chebyshev_net_forward.1} parent=5 // pred_region
        // Predicated region
        $region49: #{chebyshev_net_forward.1} parent=47 // pred_check
          %p281 = pneg %p38
        $region50: #{chebyshev_net_forward.1} parent=47 // pred_check_branch
          %283 = sbr.rel (%p281) target = $region52
        $region51: #{chebyshev_net_forward.1} parent=47 // pred_region
          %p284 = scmp.lt.s32.totalorder %s18, 2
          %s285 = scalar_select %p284, %s18, 2
          %s286 = smul.addr %s285, 8
          %s287 = scalar_lea.vmem %s0, %s286
        $region52: #{chebyshev_net_forward.1} parent=47 // pred_fallthru
          _
      $region48: #{chebyshev_net_forward.1} parent=5 // pred_fallthru
        _
      %p288 = scmp.le.s32.totalorder 1, %s18
      %p289 = scmp.lt.s32.totalorder %s18, 4
      %p290 = pnand %p288, %p289
      %p291 = pneg %p290
      // Predicated region
      $region53: #{chebyshev_net_forward.1} parent=5 // pred_check
        _
      $region54: #{chebyshev_net_forward.1} parent=5 // pred_check_branch
        %293 = sbr.rel (%p290) target = $region56
      $region55: #{chebyshev_net_forward.1} parent=5 // pred_region
        %s294 = ssub.s32 %s18, 1
        %p295 = scmp.lt.s32.totalorder %s23, 2
        %s296 = scalar_select %p295, %s23, 2
        %s297 = smul.addr %s296, 8
        %s298 = scalar_lea.vmem %s0, %s297
        %p299 = pneg %p44
        %p300 = pneg %p41
        %p301 = pneg %p65
        %p302 = pneg %p62
        %p303 = pneg %p86
        %p304 = pneg %p83
        %p305 = pneg %p107
        %p306 = pneg %p104
        %p307 = pneg %p128
        %p308 = pneg %p125
        %p309 = pneg %p149
        %p310 = pneg %p146
        %p311 = pneg %p170
        %p312 = pneg %p167
        %p313 = pneg %p191
        %p314 = pneg %p188
        %p315 = pneg %p212
        %p316 = pneg %p209
        %p317 = pneg %p238
        %p318 = pneg %p235
        %s319 = sand.u32 %s225, 1
        %s320 = scalar_lea.sflag [#allocation3], %s319
        %s321 = sand.u32 %s225, 1
        %s322 = smul.addr %s321, 16
        %s323 = scalar_lea.vmem [#allocation2], %s322
        %p324 = scmp.lt.s32.totalorder %s23, 2
        %s325 = scalar_select %p324, %s23, 2
        %s326 = smul.addr %s325, 8
        %s327 = scalar_lea.vmem %s0, %s326
        %v328 = vld [vmem:[%s327] sm:$0xff]
        %v329 = vld [vmem:[%s1] sm:$0x7]
        %331 = vset.pattern.permute.xlu0 0
        %332 = vperm.xlu0 %331, %v328
        %v333 = vpop.permute.xlu0 %332
        %v335 = vperm.slane %v329, 0
        %v336 = vmul.f32 %v333, %v335
        %337 = vset.pattern.permute.xlu0 1
        %338 = vperm.xlu0 %337, %v328
        %v339 = vpop.permute.xlu0 %338
        %v341 = vperm.slane %v329, 1
        %v342 = vmul.f32 %v339, %v341
        %v343 = vadd.f32 %v336, %v342
        %344 = vset.pattern.permute.xlu0 2
        %345 = vperm.xlu0 %344, %v328
        %v346 = vpop.permute.xlu0 %345
        %v348 = vperm.slane %v329, 2
        %v349 = vmul.f32 %v346, %v348
        %v350 = vadd.f32 %v343, %v349
        %v351 = vld [vmem:[%s2] sm:$0x1]
        %v353 = vperm.slane %v351, 0
        %v355 = vadd.f32 %v350, %v353
        %v356 = vmax.f32 %v355, 0.0
        %v357 = vpack.c.bf16 %v356, %v356
        %v358 = vld [vmem:[%s3] sm:$0xff]
        %v359 = vld [vmem:[%s3 + $0x8] sm:$0xff]
        %v360 = vld [vmem:[%s3 + $0x10] sm:$0xff]
        %v361 = vld [vmem:[%s3 + $0x18] sm:$0xff]
        %v362 = vld [vmem:[%s3 + $0x20] sm:$0xff]
        %v363 = vld [vmem:[%s3 + $0x28] sm:$0xff]
        %v364 = vld [vmem:[%s3 + $0x30] sm:$0xff]
        %v365 = vld [vmem:[%s3 + $0x38] sm:$0xff]
        %v366 = vld [vmem:[%s3 + $0x40] sm:$0xff]
        %v367 = vld [vmem:[%s3 + $0x48] sm:$0xff]
        %v368 = vld [vmem:[%s3 + $0x50] sm:$0xff]
        %v369 = vld [vmem:[%s3 + $0x58] sm:$0xff]
        %v370 = vld [vmem:[%s3 + $0x60] sm:$0xff]
        %v371 = vld [vmem:[%s3 + $0x68] sm:$0xff]
        %v372 = vld [vmem:[%s3 + $0x70] sm:$0xff]
        %v373 = vld [vmem:[%s3 + $0x78] sm:$0xff]
        %v374 = vld [vmem:[%s4] sm:$0x3]
        %v376 = vperm.slane %v374, 0
        %v377 = vperm.slane %v374, 1
        %v396 = vunpack.c.l.b16 %v358
        %v397 = vunpack.c.h.b16 %v358
        %v398 = vunpack.c.l.b16 %v359
        %v399 = vunpack.c.h.b16 %v359
        %v400 = vunpack.c.l.b16 %v360
        %v401 = vunpack.c.h.b16 %v360
        %v402 = vunpack.c.l.b16 %v361
        %v403 = vunpack.c.h.b16 %v361
        %v404 = vunpack.c.l.b16 %v362
        %v405 = vunpack.c.h.b16 %v362
        %v406 = vunpack.c.l.b16 %v363
        %v407 = vunpack.c.h.b16 %v363
        %v408 = vunpack.c.l.b16 %v364
        %v409 = vunpack.c.h.b16 %v364
        %v410 = vunpack.c.l.b16 %v365
        %v411 = vunpack.c.h.b16 %v365
        %v412 = vunpack.c.l.b16 %v366
        %v413 = vunpack.c.h.b16 %v366
        %v414 = vunpack.c.l.b16 %v367
        %v415 = vunpack.c.h.b16 %v367
        %v416 = vunpack.c.l.b16 %v368
        %v417 = vunpack.c.h.b16 %v368
        %v418 = vunpack.c.l.b16 %v369
        %v419 = vunpack.c.h.b16 %v369
        %v420 = vunpack.c.l.b16 %v370
        %v421 = vunpack.c.h.b16 %v370
        %v422 = vunpack.c.l.b16 %v371
        %v423 = vunpack.c.h.b16 %v371
        %v424 = vunpack.c.l.b16 %v372
        %v425 = vunpack.c.h.b16 %v372
        %v426 = vunpack.c.l.b16 %v373
        %v427 = vunpack.c.h.b16 %v373
        %v428 = vpack.c.b16 %v398, %v396
        %v429 = vpack.c.b16 %v399, %v397
        %v430 = vpack.c.b16 %v402, %v400
        %v431 = vpack.c.b16 %v403, %v401
        %v432 = vpack.c.b16 %v406, %v404
        %v433 = vpack.c.b16 %v407, %v405
        %v434 = vpack.c.b16 %v410, %v408
        %v435 = vpack.c.b16 %v411, %v409
        %v436 = vpack.c.b16 %v414, %v412
        %v437 = vpack.c.b16 %v415, %v413
        %v438 = vpack.c.b16 %v418, %v416
        %v439 = vpack.c.b16 %v419, %v417
        %v440 = vpack.c.b16 %v422, %v420
        %v441 = vpack.c.b16 %v423, %v421
        %v442 = vpack.c.b16 %v426, %v424
        %v443 = vpack.c.b16 %v427, %v425
        %460 = vmatpush.bf16.msra.mxu0 %v442
        %461 = vmatpush.bf16.msra.mxu0 %v440
        %462 = vmatpush.bf16.msra.mxu0 %v438
        %463 = vmatpush.bf16.msra.mxu0 %v436
        %464 = vmatpush.bf16.msra.mxu0 %v434
        %465 = vmatpush.bf16.msra.mxu0 %v432
        %466 = vmatpush.bf16.msra.mxu0 %v430
        %467 = vmatpush.bf16.msra.mxu0 %v428
        %468 = vmatmul.bf16.gmra.mxu0 %v357
        %v469 = vpop.f32.mrf.mxu0
        %v470 = vadd.f32 %v376, %v469
        %v471 = vpop.f32.mrf.mxu0
        %472 = vdwg.mxu0
        %473 = vmatpush.bf16.msra.mxu0 %v443
        %474 = vmatpush.bf16.msra.mxu0 %v441
        %475 = vmatpush.bf16.msra.mxu0 %v439
        %476 = vmatpush.bf16.msra.mxu0 %v437
        %477 = vmatpush.bf16.msra.mxu0 %v435
        %478 = vmatpush.bf16.msra.mxu0 %v433
        %479 = vmatpush.bf16.msra.mxu0 %v431
        %480 = vmatpush.bf16.msra.mxu0 %v429
        %481 = vmatmul.bf16.gmra.mxu0 %v357
        %v482 = vpop.f32.mrf.mxu0
        %v483 = vadd.f32 %v377, %v482
        %v484 = vpop.f32.mrf.mxu0
        %485 = vdwg.mxu0
        %v486 = vmax.f32 %v470, 0.0
        %v487 = vmax.f32 %v483, 0.0
        %v488 = vpack.c.bf16 %v486, %v486
        %v489 = vpack.c.bf16 %v487, %v487
        %v490 = vld [vmem:[%s5] sm:$0xf]
        %v491 = vld [vmem:[%s5 + $0x4] sm:$0xf]
        %v492 = vld [vmem:[%s5 + $0x8] sm:$0xf]
        %v493 = vld [vmem:[%s5 + $0xc] sm:$0xf]
        %v494 = vld [vmem:[%s5 + $0x10] sm:$0xf]
        %v495 = vld [vmem:[%s5 + $0x14] sm:$0xf]
        %v496 = vld [vmem:[%s5 + $0x18] sm:$0xf]
        %v497 = vld [vmem:[%s5 + $0x1c] sm:$0xf]
        %v498 = vld [vmem:[%s5 + $0x20] sm:$0xf]
        %v499 = vld [vmem:[%s5 + $0x24] sm:$0xf]
        %v500 = vld [vmem:[%s5 + $0x28] sm:$0xf]
        %v501 = vld [vmem:[%s5 + $0x2c] sm:$0xf]
        %v502 = vld [vmem:[%s5 + $0x30] sm:$0xf]
        %v503 = vld [vmem:[%s5 + $0x34] sm:$0xf]
        %v504 = vld [vmem:[%s5 + $0x38] sm:$0xf]
        %v505 = vld [vmem:[%s5 + $0x3c] sm:$0xf]
        %v506 = vld [vmem:[%s5 + $0x40] sm:$0xf]
        %v507 = vld [vmem:[%s5 + $0x44] sm:$0xf]
        %v508 = vld [vmem:[%s5 + $0x48] sm:$0xf]
        %v509 = vld [vmem:[%s5 + $0x4c] sm:$0xf]
        %v510 = vld [vmem:[%s5 + $0x50] sm:$0xf]
        %v511 = vld [vmem:[%s5 + $0x54] sm:$0xf]
        %v512 = vld [vmem:[%s5 + $0x58] sm:$0xf]
        %v513 = vld [vmem:[%s5 + $0x5c] sm:$0xf]
        %v514 = vld [vmem:[%s5 + $0x60] sm:$0xf]
        %v515 = vld [vmem:[%s5 + $0x64] sm:$0xf]
        %v516 = vld [vmem:[%s5 + $0x68] sm:$0xf]
        %v517 = vld [vmem:[%s5 + $0x6c] sm:$0xf]
        %v518 = vld [vmem:[%s5 + $0x70] sm:$0xf]
        %v519 = vld [vmem:[%s5 + $0x74] sm:$0xf]
        %v520 = vld [vmem:[%s5 + $0x78] sm:$0xf]
        %v521 = vld [vmem:[%s5 + $0x7c] sm:$0xf]
        %v522 = vld [vmem:[%s6] sm:$0x1]
        %v524 = vperm.slane %v522, 0
        %v558 = vunpack.c.l.b16 %v490
        %v559 = vunpack.c.l.b16 %v491
        %v560 = vunpack.c.l.b16 %v492
        %v561 = vunpack.c.l.b16 %v493
        %v562 = vunpack.c.l.b16 %v494
        %v563 = vunpack.c.l.b16 %v495
        %v564 = vunpack.c.l.b16 %v496
        %v565 = vunpack.c.l.b16 %v497
        %v566 = vunpack.c.l.b16 %v498
        %v567 = vunpack.c.l.b16 %v499
        %v568 = vunpack.c.l.b16 %v500
        %v569 = vunpack.c.l.b16 %v501
        %v570 = vunpack.c.l.b16 %v502
        %v571 = vunpack.c.l.b16 %v503
        %v572 = vunpack.c.l.b16 %v504
        %v573 = vunpack.c.l.b16 %v505
        %v574 = vunpack.c.l.b16 %v506
        %v575 = vunpack.c.l.b16 %v507
        %v576 = vunpack.c.l.b16 %v508
        %v577 = vunpack.c.l.b16 %v509
        %v578 = vunpack.c.l.b16 %v510
        %v579 = vunpack.c.l.b16 %v511
        %v580 = vunpack.c.l.b16 %v512
        %v581 = vunpack.c.l.b16 %v513
        %v582 = vunpack.c.l.b16 %v514
        %v583 = vunpack.c.l.b16 %v515
        %v584 = vunpack.c.l.b16 %v516
        %v585 = vunpack.c.l.b16 %v517
        %v586 = vunpack.c.l.b16 %v518
        %v587 = vunpack.c.l.b16 %v519
        %v588 = vunpack.c.l.b16 %v520
        %v589 = vunpack.c.l.b16 %v521
        %v590 = vpack.c.b16 %v559, %v558
        %v591 = vpack.c.b16 %v561, %v560
        %v592 = vpack.c.b16 %v563, %v562
        %v593 = vpack.c.b16 %v565, %v564
        %v594 = vpack.c.b16 %v567, %v566
        %v595 = vpack.c.b16 %v569, %v568
        %v596 = vpack.c.b16 %v571, %v570
        %v597 = vpack.c.b16 %v573, %v572
        %v598 = vpack.c.b16 %v575, %v574
        %v599 = vpack.c.b16 %v577, %v576
        %v600 = vpack.c.b16 %v579, %v578
        %v601 = vpack.c.b16 %v581, %v580
        %v602 = vpack.c.b16 %v583, %v582
        %v603 = vpack.c.b16 %v585, %v584
        %v604 = vpack.c.b16 %v587, %v586
        %v605 = vpack.c.b16 %v589, %v588
        %622 = vmatpush.bf16.msra.mxu0 %v597
        %623 = vmatpush.bf16.msra.mxu0 %v596
        %624 = vmatpush.bf16.msra.mxu0 %v595
        %625 = vmatpush.bf16.msra.mxu0 %v594
        %626 = vmatpush.bf16.msra.mxu0 %v593
        %627 = vmatpush.bf16.msra.mxu0 %v592
        %628 = vmatpush.bf16.msra.mxu0 %v591
        %629 = vmatpush.bf16.msra.mxu0 %v590
        %630 = vmatmul.bf16.gmra.mxu0 %v488
        %v631 = vpop.f32.mrf.mxu0
        %v632 = vadd.f32 %v524, %v631
        %v633 = vpop.f32.mrf.mxu0
        %634 = vdwg.mxu0
        %635 = vmatpush.bf16.msra.mxu0 %v605
        %636 = vmatpush.bf16.msra.mxu0 %v604
        %637 = vmatpush.bf16.msra.mxu0 %v603
        %638 = vmatpush.bf16.msra.mxu0 %v602
        %639 = vmatpush.bf16.msra.mxu0 %v601
        %640 = vmatpush.bf16.msra.mxu0 %v600
        %641 = vmatpush.bf16.msra.mxu0 %v599
        %642 = vmatpush.bf16.msra.mxu0 %v598
        %643 = vmatmul.bf16.gmra.mxu0 %v489
        %v644 = vpop.f32.mrf.mxu0
        %v645 = vadd.f32 %v632, %v644
        %v646 = vpop.f32.mrf.mxu0
        %647 = vdwg.mxu0
        %v648 = vmax.f32 %v645, 0.0
        %v649 = vpack.c.bf16 %v648, %v648
        %v650 = vld [vmem:[%s7] sm:$0xff]
        %v651 = vld [vmem:[%s7 + $0x8] sm:$0xff]
        %v652 = vld [vmem:[%s7 + $0x10] sm:$0xff]
        %v653 = vld [vmem:[%s7 + $0x18] sm:$0xff]
        %v654 = vld [vmem:[%s7 + $0x20] sm:$0xff]
        %v655 = vld [vmem:[%s7 + $0x28] sm:$0xff]
        %v656 = vld [vmem:[%s7 + $0x30] sm:$0xff]
        %v657 = vld [vmem:[%s7 + $0x38] sm:$0xff]
        %v658 = vld [vmem:[%s7 + $0x40] sm:$0xff]
        %v659 = vld [vmem:[%s7 + $0x48] sm:$0xff]
        %v660 = vld [vmem:[%s7 + $0x50] sm:$0xff]
        %v661 = vld [vmem:[%s7 + $0x58] sm:$0xff]
        %v662 = vld [vmem:[%s7 + $0x60] sm:$0xff]
        %v663 = vld [vmem:[%s7 + $0x68] sm:$0xff]
        %v664 = vld [vmem:[%s7 + $0x70] sm:$0xff]
        %v665 = vld [vmem:[%s7 + $0x78] sm:$0xff]
        %v666 = vld [vmem:[%s8] sm:$0x3]
        %v668 = vperm.slane %v666, 0
        %v669 = vperm.slane %v666, 1
        %v688 = vunpack.c.l.b16 %v650
        %v689 = vunpack.c.h.b16 %v650
        %v690 = vunpack.c.l.b16 %v651
        %v691 = vunpack.c.h.b16 %v651
        %v692 = vunpack.c.l.b16 %v652
        %v693 = vunpack.c.h.b16 %v652
        %v694 = vunpack.c.l.b16 %v653
        %v695 = vunpack.c.h.b16 %v653
        %v696 = vunpack.c.l.b16 %v654
        %v697 = vunpack.c.h.b16 %v654
        %v698 = vunpack.c.l.b16 %v655
        %v699 = vunpack.c.h.b16 %v655
        %v700 = vunpack.c.l.b16 %v656
        %v701 = vunpack.c.h.b16 %v656
        %v702 = vunpack.c.l.b16 %v657
        %v703 = vunpack.c.h.b16 %v657
        %v704 = vunpack.c.l.b16 %v658
        %v705 = vunpack.c.h.b16 %v658
        %v706 = vunpack.c.l.b16 %v659
        %v707 = vunpack.c.h.b16 %v659
        %v708 = vunpack.c.l.b16 %v660
        %v709 = vunpack.c.h.b16 %v660
        %v710 = vunpack.c.l.b16 %v661
        %v711 = vunpack.c.h.b16 %v661
        %v712 = vunpack.c.l.b16 %v662
        %v713 = vunpack.c.h.b16 %v662
        %v714 = vunpack.c.l.b16 %v663
        %v715 = vunpack.c.h.b16 %v663
        %v716 = vunpack.c.l.b16 %v664
        %v717 = vunpack.c.h.b16 %v664
        %v718 = vunpack.c.l.b16 %v665
        %v719 = vunpack.c.h.b16 %v665
        %v720 = vpack.c.b16 %v690, %v688
        %v721 = vpack.c.b16 %v691, %v689
        %v722 = vpack.c.b16 %v694, %v692
        %v723 = vpack.c.b16 %v695, %v693
        %v724 = vpack.c.b16 %v698, %v696
        %v725 = vpack.c.b16 %v699, %v697
        %v726 = vpack.c.b16 %v702, %v700
        %v727 = vpack.c.b16 %v703, %v701
        %v728 = vpack.c.b16 %v706, %v704
        %v729 = vpack.c.b16 %v707, %v705
        %v730 = vpack.c.b16 %v710, %v708
        %v731 = vpack.c.b16 %v711, %v709
        %v732 = vpack.c.b16 %v714, %v712
        %v733 = vpack.c.b16 %v715, %v713
        %v734 = vpack.c.b16 %v718, %v716
        %v735 = vpack.c.b16 %v719, %v717
        %752 = vmatpush.bf16.msra.mxu0 %v734
        %753 = vmatpush.bf16.msra.mxu0 %v732
        %754 = vmatpush.bf16.msra.mxu0 %v730
        %755 = vmatpush.bf16.msra.mxu0 %v728
        %756 = vmatpush.bf16.msra.mxu0 %v726
        %757 = vmatpush.bf16.msra.mxu0 %v724
        %758 = vmatpush.bf16.msra.mxu0 %v722
        %759 = vmatpush.bf16.msra.mxu0 %v720
        %760 = vmatmul.bf16.gmra.mxu0 %v649
        %v761 = vpop.f32.mrf.mxu0
        %v762 = vadd.f32 %v668, %v761
        %v763 = vpop.f32.mrf.mxu0
        %764 = vdwg.mxu0
        %765 = vmatpush.bf16.msra.mxu0 %v735
        %766 = vmatpush.bf16.msra.mxu0 %v733
        %767 = vmatpush.bf16.msra.mxu0 %v731
        %768 = vmatpush.bf16.msra.mxu0 %v729
        %769 = vmatpush.bf16.msra.mxu0 %v727
        %770 = vmatpush.bf16.msra.mxu0 %v725
        %771 = vmatpush.bf16.msra.mxu0 %v723
        %772 = vmatpush.bf16.msra.mxu0 %v721
        %773 = vmatmul.bf16.gmra.mxu0 %v649
        %v774 = vpop.f32.mrf.mxu0
        %v775 = vadd.f32 %v669, %v774
        %v776 = vpop.f32.mrf.mxu0
        %777 = vdwg.mxu0
        %778 = vst [vmem:[%s323] sm:$0xff] %v762
        %vm779 = vcmask 588800
        %780 = vst.msk [vmem:[%s323 + $0x8] sm:$0xff] %vm779, %v775
        %s781 = sand.u32 %s225, 1
        %s782 = scalar_lea.sflag [#allocation3], %s781
        %s783 = sand.u32 %s225, 1
        %s784 = smul.addr %s783, 16
        %s785 = scalar_lea.vmem [#allocation2], %s784
        // Predicated region
        $region57: #{chebyshev_net_forward.1} parent=55 // pred_check
          %p786 = pneg %p235
        $region58: #{chebyshev_net_forward.1} parent=55 // pred_check_branch
          %788 = sbr.rel (%p786) target = $region60
        $region59: #{chebyshev_net_forward.1} parent=55 // pred_region
          %790 = vsyncadd %s782, 0
          %s791 = smul.addr %s23, 2
          %s792 = smul.addr %s791, 8
          %s793 = scalar_lea.hbm %s9, %s792
          %s795 = sshll.u32 %s785, 4
          %s796 = int_to_ptr.vmem [resolvable:$true] %s795
          %s797 = sshll.u32 %s793, 4
          %s798 = int_to_ptr.hbm [resolvable:$true] %s797
          %800 = dma.vmem_to_hbm [thread:$0]  %s796, 256, %s798, %s782
        $region60: #{chebyshev_net_forward.1} parent=55 // pred_fallthru
          _
      $region56: #{chebyshev_net_forward.1} parent=5 // pred_fallthru
        _
      %p801 = scmp.le.s32.totalorder 2, %s18
      // Predicated region
      $region61: #{chebyshev_net_forward.1} parent=5 // pred_check
        %p802 = pneg %p801
      $region62: #{chebyshev_net_forward.1} parent=5 // pred_check_branch
        %804 = sbr.rel (%p802) target = $region64
      $region63: #{chebyshev_net_forward.1} parent=5 // pred_region
        %s805 = ssub.s32 %s18, 2
        // Predicated region
        $region65: #{chebyshev_net_forward.1} parent=63 // pred_check
          %p806 = pneg %p241
        $region66: #{chebyshev_net_forward.1} parent=63 // pred_check_branch
          %808 = sbr.rel (%p806) target = $region68
        $region67: #{chebyshev_net_forward.1} parent=63 // pred_region
          %s809 = sand.u32 %s226, 1
          %s810 = scalar_lea.sflag [#allocation3], %s809
          %s811 = sand.u32 %s226, 1
          %s812 = smul.addr %s811, 16
          %s813 = scalar_lea.vmem [#allocation2], %s812
          %815 = dma.done %s810, 256
        $region68: #{chebyshev_net_forward.1} parent=63 // pred_fallthru
          _
      $region64: #{chebyshev_net_forward.1} parent=5 // pred_fallthru
        _
    $region6: #{chebyshev_net_forward.1} parent=1 // loop_footer
      %s22 = sadd.s32 1, %s18
    $region7: #{chebyshev_net_forward.1} parent=1 // loop_footer_branch
      %17 = sbr.rel target = $region3
    $region8: #{chebyshev_net_forward.1} parent=1 // loop_exit
      _
    %816 = vsyncpa [#allocation3], 1
    %s817 = scalar_lea.sflag [#allocation3], 1
    %818 = vsyncpa %s817, 1

</llo_original>
